<compile_context>
chip_gen: v7x
topology: tpu7x:2x2x1
jax: 0.10.0
libtpu: 0.0.40
codegen_flags: <defaults>
</compile_context>

<pallas_src>
import functools
import jax
import jax.numpy as jnp
from jax.experimental import pallas as pl
from jax.experimental.pallas import tpu as pltpu


def _round_up(x, m):
    return ((x + m - 1) // m) * m


def _fused_kernel(u_ref, it_ref, wu_ref, wi_ref, b1_ref, w2_ref, b2_ref, o_ref):
    # Cast activations to the MXU operand dtype in-register (free VPU work at mem-bound);
    # avoids a wrapper-side astype, i.e. an extra HBM read+write pass over the batch.
    u = u_ref[...].astype(wu_ref.dtype)
    it = it_ref[...].astype(wi_ref.dtype)

    # Folded (encoders + concat + first MLP layer): two MXU matmuls, f32 accumulation.
    h = (jnp.dot(u, wu_ref[...], preferred_element_type=jnp.float32)
         + jnp.dot(it, wi_ref[...], preferred_element_type=jnp.float32)
         + b1_ref[...])
    h = jnp.maximum(h, 0.0)                                   # ReLU (f32, VPU)

    # hidden -> 1 head: VPU multiply + lane reduction (avoids an N=1 MXU matmul).
    scores = jnp.sum(h * w2_ref[...], axis=-1)                # (tb,)
    # Relayout onto the lane axis so the output store is lane-dense (XLU has slack).
    out_row = scores[None, :] + b2_ref[0]                     # (1, tb)
    o_ref[...] = out_row.astype(o_ref.dtype)


def prepare_fused_params(params, compute_dtype=jnp.bfloat16):
    """Folds the purely-linear encoders into the first MLP layer and lays out all
    weights/biases in kernel-ready form.  Call ONCE, outside the per-step hot path."""
    wu, bu, wi, bi, w1, b1, w2, b2 = params
    E = wu.shape[1]
    w1u, w1i = w1[:E, :], w1[E:, :]

    wu_f = (wu @ w1u).astype(compute_dtype)                   # (user_dim, hidden)
    wi_f = (wi @ w1i).astype(compute_dtype)                   # (item_dim, hidden)
    b1_f = (bu @ w1u + bi @ w1i + b1).reshape(1, -1).astype(jnp.float32)  # (1, hidden)

    assert w2.shape[1] == 1, "fused head implemented for out_dim == 1 (as in the module)"
    # TODO(synk): for out_dim > 1 fall back to an MXU matmul head instead of the lane reduce.
    w2_row = w2.reshape(1, -1).astype(jnp.float32)            # (1, hidden)
    b2_s = b2.reshape(1).astype(jnp.float32)                  # (1,)  -> SMEM scalar

    return (wu_f, wi_f, b1_f, w2_row, b2_s)


@functools.partial(jax.jit, static_argnames=("block_b",))
def dual_embedding_forward(user_vec, item_vec, fused_params, *, block_b=2048):
    """Full EmbeddingModel forward as one Pallas kernel, tiled over the batch."""
    wu_f, wi_f, b1_f, w2_row, b2_s = fused_params
    B = user_vec.shape[0]
    user_dim, hidden = wu_f.shape
    item_dim = wi_f.shape[0]

    # Only degenerate tiny batches (<8 rows) get padded up to one f32 sublane group;
    # normal batches are never copied -- ragged tails are handled by the cdiv grid.
    Bp = max(B, 8)
    if Bp != B:
        user_vec = jnp.pad(user_vec, ((0, Bp - B), (0, 0)))
        item_vec = jnp.pad(item_vec, ((0, Bp - B), (0, 0)))

    # Batch tile: as large as block_b (2048 x 64 features x f32 ~= 0.5 MiB per buffer,
    # tiny vs. 64 MiB VMEM on v7x), but keep >= 2 grid steps when the batch allows it so
    # the "parallel" grid axis can shard across v7x's two TensorCores.
    tb = min(block_b, Bp)
    if Bp > 16:
        tb = min(tb, _round_up(pl.cdiv(Bp, 2), 8))
    tb = max(8, (tb // 8) * 8)
    num_tiles = pl.cdiv(Bp, tb)

    act_spec = lambda d: pl.BlockSpec((tb, d), lambda b: (b, 0))
    resident = lambda a: pl.BlockSpec(a.shape, lambda b: (0, 0))   # VMEM-resident weights

    out = pl.pallas_call(
        _fused_kernel,
        out_shape=jax.ShapeDtypeStruct((num_tiles, tb), jnp.float32),
        grid_spec=pltpu.PrefetchScalarGridSpec(
            num_scalar_prefetch=0,
            grid=(num_tiles,),
            in_specs=[act_spec(user_dim), act_spec(item_dim),
                      resident(wu_f), resident(wi_f), resident(b1_f), resident(w2_row),
                      pl.BlockSpec(memory_space=pltpu.MemorySpace.SMEM)],
            out_specs=pl.BlockSpec((1, tb), lambda b: (b, 0)),
        ),
        compiler_params=pltpu.CompilerParams(
            dimension_semantics=("parallel",),     # shard batch grid across TCs (v7x)
        ),
    )(user_vec, item_vec, wu_f, wi_f, b1_f, w2_row, b2_s)

    # Lane-dense slab -> (B, 1) column; any garbage tail rows are sliced off here.
    return out.reshape(-1, 1)[:B]


def reference_forward(user_vec, item_vec, params):
    """Pure-JAX reference matching the PyTorch module semantics exactly."""
    wu, bu, wi, bi, w1, b1, w2, b2 = params
    u_emb = user_vec @ wu + bu
    i_emb = item_vec @ wi + bi
    x = jnp.concatenate([u_emb, i_emb], axis=1)
    h = jnp.maximum(x @ w1 + b1, 0.0)
    return h @ w2 + b2


def make_params(key, user_dim, item_dim, embed_dim, hidden_dim, out_dim):
    ks = jax.random.split(key, 8)
    scale = 0.1
    wu = scale * jax.random.normal(ks[0], (user_dim, embed_dim), jnp.float32)
    bu = scale * jax.random.normal(ks[1], (embed_dim,), jnp.float32)
    wi = scale * jax.random.normal(ks[2], (item_dim, embed_dim), jnp.float32)
    bi = scale * jax.random.normal(ks[3], (embed_dim,), jnp.float32)
    w1 = scale * jax.random.normal(ks[4], (2 * embed_dim, hidden_dim), jnp.float32)
    b1 = scale * jax.random.normal(ks[5], (hidden_dim,), jnp.float32)
    w2 = scale * jax.random.normal(ks[6], (hidden_dim, out_dim), jnp.float32)
    b2 = scale * jax.random.normal(ks[7], (out_dim,), jnp.float32)
    return (wu, bu, wi, bi, w1, b1, w2, b2)


if __name__ == "__main__":
    key = jax.random.PRNGKey(0)
    k_u, k_i, k_p = jax.random.split(key, 3)

    B, USER_DIM, ITEM_DIM, EMBED, HIDDEN, OUT = 8, 32, 32, 16, 32, 1

    user_vec = jax.random.normal(k_u, (B, USER_DIM), jnp.float32)
    item_vec = jax.random.normal(k_i, (B, ITEM_DIM), jnp.float32)
    params = make_params(k_p, USER_DIM, ITEM_DIM, EMBED, HIDDEN, OUT)
    ref = reference_forward(user_vec, item_vec, params)

    # f32 weight path (strict correctness check vs. the unfused reference).
    fused_f32 = prepare_fused_params(params, compute_dtype=jnp.float32)
    out = dual_embedding_forward(user_vec, item_vec, fused_f32)
    out = jax.block_until_ready(out)
    assert out.shape == (B, OUT), out.shape
    assert jnp.allclose(out, ref, atol=1e-4, rtol=1e-4), "f32 mismatch vs reference"

    # Default bf16 MXU-operand path (halves activation/weight DMA bytes on v6e/v7x);
    # f32 accumulation and f32 bias/ReLU/reduce, so only cast-level error remains.
    fused_bf16 = prepare_fused_params(params)   # compute_dtype defaults to bf16
    out_bf16 = dual_embedding_forward(user_vec, item_vec, fused_bf16)
    out_bf16 = jax.block_until_ready(out_bf16)
    assert out_bf16.shape == (B, OUT), out_bf16.shape
    assert jnp.allclose(out_bf16, ref, atol=5e-2, rtol=5e-2), "bf16 mismatch vs reference"

    print("KERNEL_OK")
</pallas_src>

<mosaic_0001>
module attributes {stable_mosaic.version = 11 : i64} {
  func.func @_fused_kernel(%arg0: i32, %arg1: memref<8x32xf32, #tpu.memory_space<vmem>>, %arg2: memref<8x32xf32, #tpu.memory_space<vmem>>, %arg3: memref<32x32xf32, #tpu.memory_space<vmem>>, %arg4: memref<32x32xf32, #tpu.memory_space<vmem>>, %arg5: memref<1x32xf32, #tpu.memory_space<vmem>>, %arg6: memref<1x32xf32, #tpu.memory_space<vmem>>, %arg7: memref<1xf32, #tpu.memory_space<smem>>, %arg8: memref<1x8xf32, #tpu.memory_space<vmem>>) attributes {dimension_semantics = [#tpu.dimension_semantics<parallel>], iteration_bounds = array<i64: 1>, scalar_prefetch = 0 : i64, scratch_operands = 0 : i64, tpu.core_type = #tpu.core_type<tc>, window_params = [{transform_indices = @transform_0, window_bounds = array<i64: 8, 32>}, {transform_indices = @transform_1, window_bounds = array<i64: 8, 32>}, {pipeline_mode = #tpu.pipeline_mode<synchronous>, transform_indices = @transform_2, window_bounds = array<i64: 32, 32>}, {pipeline_mode = #tpu.pipeline_mode<synchronous>, transform_indices = @transform_3, window_bounds = array<i64: 32, 32>}, {pipeline_mode = #tpu.pipeline_mode<synchronous>, transform_indices = @transform_4, window_bounds = array<i64: 1, 32>}, {pipeline_mode = #tpu.pipeline_mode<synchronous>, transform_indices = @transform_5, window_bounds = array<i64: 1, 32>}, {transform_indices = @transform_6, window_bounds = array<i64: 1>}, {transform_indices = @transform_7, window_bounds = array<i64: 1, 8>}]} {
    %c0 = arith.constant 0 : index
    %c0_0 = arith.constant 0 : index
    %0 = vector.load %arg1[%c0, %c0_0] : memref<8x32xf32, #tpu.memory_space<vmem>>, vector<8x32xf32>
    %c0_1 = arith.constant 0 : index
    %c0_2 = arith.constant 0 : index
    %1 = vector.load %arg2[%c0_1, %c0_2] : memref<8x32xf32, #tpu.memory_space<vmem>>, vector<8x32xf32>
    %c0_3 = arith.constant 0 : index
    %c0_4 = arith.constant 0 : index
    %2 = vector.load %arg3[%c0_3, %c0_4] : memref<32x32xf32, #tpu.memory_space<vmem>>, vector<32x32xf32>
    %cst = arith.constant dense<0.000000e+00> : vector<8x32xf32>
    %3 = tpu.matmul %0, %2, %cst {dimension_numbers = #tpu.dot_dimension_numbers<[1], [0], [0], [1], [0, 0, 1, 1], [], []>} : vector<8x32xf32>, vector<32x32xf32>, vector<8x32xf32> -> vector<8x32xf32>
    %c0_5 = arith.constant 0 : index
    %c0_6 = arith.constant 0 : index
    %4 = vector.load %arg4[%c0_5, %c0_6] : memref<32x32xf32, #tpu.memory_space<vmem>>, vector<32x32xf32>
    %cst_7 = arith.constant dense<0.000000e+00> : vector<8x32xf32>
    %5 = tpu.matmul %1, %4, %cst_7 {dimension_numbers = #tpu.dot_dimension_numbers<[1], [0], [0], [1], [0, 0, 1, 1], [], []>} : vector<8x32xf32>, vector<32x32xf32>, vector<8x32xf32> -> vector<8x32xf32>
    %6 = arith.addf %3, %5 : vector<8x32xf32>
    %c0_8 = arith.constant 0 : index
    %c0_9 = arith.constant 0 : index
    %7 = vector.load %arg5[%c0_8, %c0_9] : memref<1x32xf32, #tpu.memory_space<vmem>>, vector<1x32xf32>
    %8 = vector.broadcast %7 : vector<1x32xf32> to vector<8x32xf32>
    %9 = arith.addf %6, %8 : vector<8x32xf32>
    %cst_10 = arith.constant 0.000000e+00 : f32
    %10 = vector.broadcast %cst_10 : f32 to vector<8x32xf32>
    %11 = arith.maximumf %9, %10 : vector<8x32xf32>
    %c0_11 = arith.constant 0 : index
    %c0_12 = arith.constant 0 : index
    %12 = vector.load %arg6[%c0_11, %c0_12] : memref<1x32xf32, #tpu.memory_space<vmem>>, vector<1x32xf32>
    %13 = vector.broadcast %12 : vector<1x32xf32> to vector<8x32xf32>
    %14 = arith.mulf %11, %13 : vector<8x32xf32>
    %cst_13 = arith.constant dense<0.000000e+00> : vector<8xf32>
    %15 = vector.multi_reduction <add>, %14, %cst_13 [1] : vector<8x32xf32> to vector<8xf32>
    %16 = vector.shape_cast %15 : vector<8xf32> to vector<1x8xf32>
    %c0_14 = arith.constant 0 : index
    %17 = memref.load %arg7[%c0_14] : memref<1xf32, #tpu.memory_space<smem>>
    %18 = vector.broadcast %17 : f32 to vector<1x8xf32>
    %19 = arith.addf %16, %18 : vector<1x8xf32>
    %c0_15 = arith.constant 0 : index
    %c0_16 = arith.constant 0 : index
    %20 = vector.load %arg8[%c0_15, %c0_16] : memref<1x8xf32, #tpu.memory_space<vmem>>, vector<1x8xf32>
    tpu.vector_store %arg8[%c0_15, %c0_16], %19 {strides = array<i32>} : memref<1x8xf32, #tpu.memory_space<vmem>>, vector<1x8xf32>,
    return
  }
  func.func @transform_0(%arg0: i32) -> (i32, i32) {
    %c0_i32 = arith.constant 0 : i32
    %c0_i32_0 = arith.constant 0 : i32
    return %arg0, %c0_i32 : i32, i32
  }
  func.func @transform_1(%arg0: i32) -> (i32, i32) {
    %c0_i32 = arith.constant 0 : i32
    %c0_i32_0 = arith.constant 0 : i32
    return %arg0, %c0_i32 : i32, i32
  }
  func.func @transform_2(%arg0: i32) -> (i32, i32) {
    %c0_i32 = arith.constant 0 : i32
    %c0_i32_0 = arith.constant 0 : i32
    %c0_i32_1 = arith.constant 0 : i32
    return %c0_i32, %c0_i32_0 : i32, i32
  }
  func.func @transform_3(%arg0: i32) -> (i32, i32) {
    %c0_i32 = arith.constant 0 : i32
    %c0_i32_0 = arith.constant 0 : i32
    %c0_i32_1 = arith.constant 0 : i32
    return %c0_i32, %c0_i32_0 : i32, i32
  }
  func.func @transform_4(%arg0: i32) -> (i32, i32) {
    %c0_i32 = arith.constant 0 : i32
    %c0_i32_0 = arith.constant 0 : i32
    %c0_i32_1 = arith.constant 0 : i32
    return %c0_i32, %c0_i32_0 : i32, i32
  }
  func.func @transform_5(%arg0: i32) -> (i32, i32) {
    %c0_i32 = arith.constant 0 : i32
    %c0_i32_0 = arith.constant 0 : i32
    %c0_i32_1 = arith.constant 0 : i32
    return %c0_i32, %c0_i32_0 : i32, i32
  }
  func.func @transform_6(%arg0: i32) -> i32 {
    %c0_i32 = arith.constant 0 : i32
    %c0_i32_0 = arith.constant 0 : i32
    return %c0_i32 : i32
  }
  func.func @transform_7(%arg0: i32) -> (i32, i32) {
    %c0_i32 = arith.constant 0 : i32
    %c0_i32_0 = arith.constant 0 : i32
    return %arg0, %c0_i32 : i32, i32
  }
}

</mosaic_0001>

<llo_original>
// kernel: dual_embedding_forward.1
$region0: #{dual_embedding_forward.1}
  #allocation0 [shape = 'u32[]', space=smem, size = 0x4, offset = 0x4, fixed_abs, tag = 'smem constant byte address 0x4 - core index']
  #allocation1 [shape = 'u32[144,128]{1,0:T(1,128)}', space=vmem, size = 0x12000, scoped, tag = 'internal scratch']
  #allocation2 [shape = 'f32[1]{0:T(128)S(6)}', space=smem, size = 0x200, scoped, tag = 'scoped memory for dual_embedding_forward.1']
  %s0 = inlined_call_operand.hbm [shape: f32[8,32], index: 0, kind: input, shape index: {}]
  %s1 = inlined_call_operand.hbm [shape: f32[8,32], index: 1, kind: input, shape index: {}]
  %s2 = inlined_call_operand.hbm [shape: f32[32,32], index: 2, kind: input, shape index: {}]
  %s3 = inlined_call_operand.hbm [shape: f32[32,32], index: 3, kind: input, shape index: {}]
  %s4 = inlined_call_operand.vmem [shape: f32[1,32], index: 4, kind: input, shape index: {}]
  %s5 = inlined_call_operand.vmem [shape: f32[1,32], index: 5, kind: input, shape index: {}]
  %s6 = inlined_call_operand.<no memory space> [shape: f32[1], index: 6, kind: input, shape index: {}]
  %s7 = inlined_call_operand.hbm [shape: f32[1,8], index: 7, kind: output, shape index: {}]
  %s8 = sld [smem:[#allocation0]]
  $region54: #{dual_embedding_forward.1} parent=0
    _
  %s10 = ssub.s32 1, %s8
  %s11 = scalar_select 0, %s10, %s8
  %12 = sst [smem:[#allocation2]] %s6
  $region1: #{dual_embedding_forward.1} parent=0
    #allocation3 [shape = 'u8[4096]{0}', space=vmem, size = 0x1000, scoped, tag = 'input window, operand 0, single buffered']
    #allocation4 [shape = 's32[1]{0}', space=sflag, size = 0x4, scoped, tag = 'scoped memory for dual_embedding_forward.1']
    #allocation5 [shape = 's32[1]{0}', space=sflag, size = 0x4, scoped, tag = 'scoped memory for dual_embedding_forward.1']
    #allocation6 [shape = 'u8[4096]{0}', space=vmem, size = 0x1000, scoped, tag = 'input window, operand 1, single buffered']
    #allocation7 [shape = 's32[1]{0}', space=sflag, size = 0x4, scoped, tag = 'scoped memory for dual_embedding_forward.1']
    #allocation8 [shape = 'u8[16384]{0}', space=vmem, size = 0x4000, scoped, tag = 'input window, operand 2, single buffered']
    #allocation9 [shape = 'u8[16384]{0}', space=vmem, size = 0x4000, scoped, tag = 'input window, operand 3, single buffered']
    #allocation10 [shape = 's32[1]{0}', space=sflag, size = 0x4, scoped, tag = 'scoped memory for dual_embedding_forward.1']
    #allocation11 [shape = 'u8[512]{0}', space=vmem, size = 0x400, scoped, tag = 'output window, operand 0, single buffered']
    %13 = vsyncpa [#allocation4], 0
    %14 = vsyncpa [#allocation7], 0
    %15 = vsyncpa [#allocation10], 0
    %16 = vsyncpa [#allocation5], 0
    // Predicated region
    $region2: #{dual_embedding_forward.1} parent=1 // pred_check
      _
    $region3: #{dual_embedding_forward.1} parent=1 // pred_check_branch
      %18 = sbr.rel (0) target = $region5
    $region4: #{dual_embedding_forward.1} parent=1 // pred_region
      %s20 = ssub.s32 128, 128
      %21 = vsyncadd [#allocation4], %s20
      %s23 = sshll.u32 [#allocation3], 4
      %s24 = int_to_ptr.vmem [resolvable:$true] %s23
      %26 = dma.hbm_to_vmem [thread:$0]  %s0, 128, %s24, [#allocation4]
    $region5: #{dual_embedding_forward.1} parent=1 // pred_fallthru
      _
    // Predicated region
    $region6: #{dual_embedding_forward.1} parent=1 // pred_check
      _
    $region7: #{dual_embedding_forward.1} parent=1 // pred_check_branch
      %28 = sbr.rel (0) target = $region9
    $region8: #{dual_embedding_forward.1} parent=1 // pred_region
      %s30 = ssub.s32 128, 128
      %31 = vsyncadd [#allocation7], %s30
      %s33 = sshll.u32 [#allocation6], 4
      %s34 = int_to_ptr.vmem [resolvable:$true] %s33
      %36 = dma.hbm_to_vmem [thread:$0]  %s1, 128, %s34, [#allocation7]
    $region9: #{dual_embedding_forward.1} parent=1 // pred_fallthru
      _
    // Predicated region
    $region10: #{dual_embedding_forward.1} parent=1 // pred_check
      _
    $region11: #{dual_embedding_forward.1} parent=1 // pred_check_branch
      %38 = sbr.rel (0) target = $region13
    $region12: #{dual_embedding_forward.1} parent=1 // pred_region
      %s40 = ssub.s32 512, 512
      %41 = vsyncadd [#allocation7], %s40
      %s42 = sshll.u32 [#allocation8], 4
      %s43 = int_to_ptr.vmem [resolvable:$true] %s42
      %48 = dma.hbm_to_vmem [thread:$0]  %s2, 512, %s43, [#allocation7], 128, 128, 8
    $region13: #{dual_embedding_forward.1} parent=1 // pred_fallthru
      _
    // Predicated region
    $region14: #{dual_embedding_forward.1} parent=1 // pred_check
      _
    $region15: #{dual_embedding_forward.1} parent=1 // pred_check_branch
      %50 = sbr.rel (0) target = $region17
    $region16: #{dual_embedding_forward.1} parent=1 // pred_region
      %s52 = ssub.s32 512, 512
      %53 = vsyncadd [#allocation10], %s52
      %s54 = sshll.u32 [#allocation9], 4
      %s55 = int_to_ptr.vmem [resolvable:$true] %s54
      %60 = dma.hbm_to_vmem [thread:$0]  %s3, 512, %s55, [#allocation10], 128, 128, 8
    $region17: #{dual_embedding_forward.1} parent=1 // pred_fallthru
      _
    // Predicated region
    $region18: #{dual_embedding_forward.1} parent=1 // pred_check
      _
    $region19: #{dual_embedding_forward.1} parent=1 // pred_check_branch
      %62 = sbr.rel (0) target = $region21
    $region20: #{dual_embedding_forward.1} parent=1 // pred_region
      _
    $region21: #{dual_embedding_forward.1} parent=1 // pred_fallthru
      _
    // Predicated region
    $region22: #{dual_embedding_forward.1} parent=1 // pred_check
      _
    $region23: #{dual_embedding_forward.1} parent=1 // pred_check_branch
      %64 = sbr.rel (0) target = $region25
    $region24: #{dual_embedding_forward.1} parent=1 // pred_region
      _
    $region25: #{dual_embedding_forward.1} parent=1 // pred_fallthru
      _
    // Predicated region
    $region26: #{dual_embedding_forward.1} parent=1 // pred_check
      _
    $region27: #{dual_embedding_forward.1} parent=1 // pred_check_branch
      %66 = sbr.rel (0) target = $region29
    $region28: #{dual_embedding_forward.1} parent=1 // pred_region
      _
    $region29: #{dual_embedding_forward.1} parent=1 // pred_fallthru
      _
    // Predicated region
    $region30: #{dual_embedding_forward.1} parent=1 // pred_check
      _
    $region31: #{dual_embedding_forward.1} parent=1 // pred_check_branch
      %68 = sbr.rel (0) target = $region33
    $region32: #{dual_embedding_forward.1} parent=1 // pred_region
      %69 = dma.done [#allocation4], 128
    $region33: #{dual_embedding_forward.1} parent=1 // pred_fallthru
      _
    // Predicated region
    $region34: #{dual_embedding_forward.1} parent=1 // pred_check
      _
    $region35: #{dual_embedding_forward.1} parent=1 // pred_check_branch
      %71 = sbr.rel (0) target = $region37
    $region36: #{dual_embedding_forward.1} parent=1 // pred_region
      %72 = dma.done [#allocation7], 128
    $region37: #{dual_embedding_forward.1} parent=1 // pred_fallthru
      _
    // Predicated region
    $region38: #{dual_embedding_forward.1} parent=1 // pred_check
      _
    $region39: #{dual_embedding_forward.1} parent=1 // pred_check_branch
      %74 = sbr.rel (0) target = $region41
    $region40: #{dual_embedding_forward.1} parent=1 // pred_region
      %75 = dma.done [#allocation7], 512
    $region41: #{dual_embedding_forward.1} parent=1 // pred_fallthru
      _
    // Predicated region
    $region42: #{dual_embedding_forward.1} parent=1 // pred_check
      _
    $region43: #{dual_embedding_forward.1} parent=1 // pred_check_branch
      %77 = sbr.rel (0) target = $region45
    $region44: #{dual_embedding_forward.1} parent=1 // pred_region
      %78 = dma.done [#allocation10], 512
    $region45: #{dual_embedding_forward.1} parent=1 // pred_fallthru
      _
    %v79 = vld [vmem:[#allocation3] sm:$0xff]
    %v80 = vld [vmem:[#allocation6] sm:$0xff]
    %v81 = vld [vmem:[#allocation8] sm:$0xff]
    %v82 = vld [vmem:[#allocation8 + $0x8] sm:$0xff]
    %v83 = vld [vmem:[#allocation8 + $0x10] sm:$0xff]
    %v84 = vld [vmem:[#allocation8 + $0x18] sm:$0xff]
    %v85 = vld [vmem:[#allocation9] sm:$0xff]
    %v86 = vld [vmem:[#allocation9 + $0x8] sm:$0xff]
    %v87 = vld [vmem:[#allocation9 + $0x10] sm:$0xff]
    %v88 = vld [vmem:[#allocation9 + $0x18] sm:$0xff]
    %vm89 = vcmask 261120
    %v91 = vsel %vm89, %v80, 0
    %93 = vmatprep.subr.mxu0 0.0
    %94 = vmatpush1.msra.mxu0 %v85
    %95 = vmatprep.subr.mxu0 0.0
    %96 = vmatpush1.msra.mxu0 %v86
    %97 = vmatprep.subr.mxu0 0.0
    %98 = vmatpush1.msra.mxu0 %v87
    %99 = vmatprep.subr.mxu0 0.0
    %100 = vmatpush1.msra.mxu0 %v88
    %101 = vmatprep.subr.mxu0 0.0
    %102 = vmatpush1.msra.mxu0 0.0
    %103 = vmatprep.subr.mxu0 0.0
    %104 = vmatpush1.msra.mxu0 0.0
    %105 = vmatprep.subr.mxu0 0.0
    %106 = vmatpush1.msra.mxu0 0.0
    %107 = vmatprep.subr.mxu0 0.0
    %108 = vmatpush1.msra.mxu0 0.0
    %109 = vmatprep.subr.mxu0 0.0
    %110 = vmatpush1.msra.mxu0 0.0
    %111 = vmatprep.subr.mxu0 0.0
    %112 = vmatpush1.msra.mxu0 0.0
    %113 = vmatprep.subr.mxu0 0.0
    %114 = vmatpush1.msra.mxu0 0.0
    %115 = vmatprep.subr.mxu0 0.0
    %116 = vmatpush1.msra.mxu0 0.0
    %117 = vmatprep.subr.mxu0 0.0
    %118 = vmatpush1.msra.mxu0 0.0
    %119 = vmatprep.subr.mxu0 0.0
    %120 = vmatpush1.msra.mxu0 0.0
    %121 = vmatprep.subr.mxu0 0.0
    %122 = vmatpush1.msra.mxu0 0.0
    %123 = vmatprep.subr.mxu0 0.0
    %124 = vmatpush1.msra.mxu0 0.0
    %125 = vmatprep.subr.mxu0 0.0
    %126 = vmatpush1.msra.mxu0 0.0
    %127 = vmatprep.subr.mxu0 0.0
    %128 = vmatpush1.msra.mxu0 0.0
    %129 = vmatprep.subr.mxu0 0.0
    %130 = vmatpush1.msra.mxu0 0.0
    %131 = vmatprep.subr.mxu0 0.0
    %132 = vmatpush1.msra.mxu0 0.0
    %133 = vmatprep.subr.mxu0 0.0
    %134 = vmatpush1.msra.mxu0 0.0
    %135 = vmatprep.subr.mxu0 0.0
    %136 = vmatpush1.msra.mxu0 0.0
    %137 = vmatprep.subr.mxu0 0.0
    %138 = vmatpush1.msra.mxu0 0.0
    %139 = vmatprep.subr.mxu0 0.0
    %140 = vmatpush1.msra.mxu0 0.0
    %141 = vmatprep.subr.mxu0 0.0
    %142 = vmatpush1.msra.mxu0 0.0
    %143 = vmatprep.subr.mxu0 0.0
    %144 = vmatpush1.msra.mxu0 0.0
    %145 = vmatprep.subr.mxu0 0.0
    %146 = vmatpush1.msra.mxu0 0.0
    %147 = vmatprep.subr.mxu0 0.0
    %148 = vmatpush1.msra.mxu0 0.0
    %149 = vmatprep.subr.mxu0 0.0
    %150 = vmatpush1.msra.mxu0 0.0
    %151 = vmatprep.subr.mxu0 0.0
    %152 = vmatpush1.msra.mxu0 0.0
    %153 = vmatprep.subr.mxu0 0.0
    %154 = vmatpush1.msra.mxu0 0.0
    %155 = vmatprep.subr.mxu0 0.0
    %156 = vmatpush1.msra.mxu0 0.0
    %157 = vmatprep.mubr.f32.mxu0 0.0
    %158 = vmatmul.mubr.f32.gmra.mrb[0].mxu0 %v91
    %v159 = vpop.f32.mrb[0].mxu0
    %v160 = vadd.f32 0.0, %v159
    %v161 = vpop.f32.mrb[0].mxu0
    %162 = vdwg.mxu0
    %v164 = vsel %vm89, %v79, 0
    %166 = vmatprep.subr.mxu0 0.0
    %167 = vmatpush1.msra.mxu0 %v81
    %168 = vmatprep.subr.mxu0 0.0
    %169 = vmatpush1.msra.mxu0 %v82
    %170 = vmatprep.subr.mxu0 0.0
    %171 = vmatpush1.msra.mxu0 %v83
    %172 = vmatprep.subr.mxu0 0.0
    %173 = vmatpush1.msra.mxu0 %v84
    %174 = vmatprep.subr.mxu0 0.0
    %175 = vmatpush1.msra.mxu0 0.0
    %176 = vmatprep.subr.mxu0 0.0
    %177 = vmatpush1.msra.mxu0 0.0
    %178 = vmatprep.subr.mxu0 0.0
    %179 = vmatpush1.msra.mxu0 0.0
    %180 = vmatprep.subr.mxu0 0.0
    %181 = vmatpush1.msra.mxu0 0.0
    %182 = vmatprep.subr.mxu0 0.0
    %183 = vmatpush1.msra.mxu0 0.0
    %184 = vmatprep.subr.mxu0 0.0
    %185 = vmatpush1.msra.mxu0 0.0
    %186 = vmatprep.subr.mxu0 0.0
    %187 = vmatpush1.msra.mxu0 0.0
    %188 = vmatprep.subr.mxu0 0.0
    %189 = vmatpush1.msra.mxu0 0.0
    %190 = vmatprep.subr.mxu0 0.0
    %191 = vmatpush1.msra.mxu0 0.0
    %192 = vmatprep.subr.mxu0 0.0
    %193 = vmatpush1.msra.mxu0 0.0
    %194 = vmatprep.subr.mxu0 0.0
    %195 = vmatpush1.msra.mxu0 0.0
    %196 = vmatprep.subr.mxu0 0.0
    %197 = vmatpush1.msra.mxu0 0.0
    %198 = vmatprep.subr.mxu0 0.0
    %199 = vmatpush1.msra.mxu0 0.0
    %200 = vmatprep.subr.mxu0 0.0
    %201 = vmatpush1.msra.mxu0 0.0
    %202 = vmatprep.subr.mxu0 0.0
    %203 = vmatpush1.msra.mxu0 0.0
    %204 = vmatprep.subr.mxu0 0.0
    %205 = vmatpush1.msra.mxu0 0.0
    %206 = vmatprep.subr.mxu0 0.0
    %207 = vmatpush1.msra.mxu0 0.0
    %208 = vmatprep.subr.mxu0 0.0
    %209 = vmatpush1.msra.mxu0 0.0
    %210 = vmatprep.subr.mxu0 0.0
    %211 = vmatpush1.msra.mxu0 0.0
    %212 = vmatprep.subr.mxu0 0.0
    %213 = vmatpush1.msra.mxu0 0.0
    %214 = vmatprep.subr.mxu0 0.0
    %215 = vmatpush1.msra.mxu0 0.0
    %216 = vmatprep.subr.mxu0 0.0
    %217 = vmatpush1.msra.mxu0 0.0
    %218 = vmatprep.subr.mxu0 0.0
    %219 = vmatpush1.msra.mxu0 0.0
    %220 = vmatprep.subr.mxu0 0.0
    %221 = vmatpush1.msra.mxu0 0.0
    %222 = vmatprep.subr.mxu0 0.0
    %223 = vmatpush1.msra.mxu0 0.0
    %224 = vmatprep.subr.mxu0 0.0
    %225 = vmatpush1.msra.mxu0 0.0
    %226 = vmatprep.subr.mxu0 0.0
    %227 = vmatpush1.msra.mxu0 0.0
    %228 = vmatprep.subr.mxu0 0.0
    %229 = vmatpush1.msra.mxu0 0.0
    %230 = vmatprep.mubr.f32.mxu0 0.0
    %231 = vmatmul.mubr.f32.gmra.mrb[0].mxu0 %v164
    %v232 = vpop.f32.mrb[0].mxu0
    %v233 = vadd.f32 %v160, %v232
    %v234 = vpop.f32.mrb[0].mxu0
    %235 = vdwg.mxu0
    %v236 = vld [vmem:[%s4] sm:$0x1]
    %v238 = vlaneseq
    %v239 = vshrl.u32 %v238, 7
    %v240 = vsub.s32 0, %v239
    %v241 = vrot.slane %v236, %v240
    %v243 = vadd.f32 %v233, %v241
    %v244 = vmax.f32 %v243, 0.0
    %v245 = vld [vmem:[%s5] sm:$0x1]
    %v247 = vlaneseq
    %v248 = vshrl.u32 %v247, 7
    %v249 = vsub.s32 0, %v248
    %v250 = vrot.slane %v245, %v249
    %v252 = vmul.f32 %v244, %v250
    %v253 = vsel %vm89, %v252, 0.0
    %254 = vadd.xlane.f32.xlu0 %v253
    %v255 = vpop.xlane.xlu0 %254
    %s256 = sld [smem:[#allocation2]]
    %v257 = vstv %s256
    %v258 = vadd.f32 %v255, %v257
    %v260 = vlaneseq
    %v261 = vand.u32 %v260, 127
    %v262 = vlaneseq
    %v263 = vshrl.u32 %v262, 7
    %v264 = vsub.s32 %v261, %v263
    %v265 = vrot.slane %v258, %v264
    %vm267 = vcmask 57344
    %268 = vst.msk [vmem:[#allocation11] sm:$0x1] %vm267, %v265
    // Predicated region
    $region46: #{dual_embedding_forward.1} parent=1 // pred_check
      _
    $region47: #{dual_embedding_forward.1} parent=1 // pred_check_branch
      %270 = sbr.rel (0) target = $region49
    $region48: #{dual_embedding_forward.1} parent=1 // pred_region
      %s272 = ssub.s32 16, 16
      %273 = vsyncadd [#allocation5], %s272
      %s275 = sshll.u32 [#allocation11], 4
      %s276 = int_to_ptr.vmem [resolvable:$true] %s275
      %278 = dma.vmem_to_hbm [thread:$0]  %s276, 16, %s7, [#allocation5]
    $region49: #{dual_embedding_forward.1} parent=1 // pred_fallthru
      _
    // Predicated region
    $region50: #{dual_embedding_forward.1} parent=1 // pred_check
      _
    $region51: #{dual_embedding_forward.1} parent=1 // pred_check_branch
      %280 = sbr.rel (0) target = $region53
    $region52: #{dual_embedding_forward.1} parent=1 // pred_region
      %281 = dma.done [#allocation5], 16
    $region53: #{dual_embedding_forward.1} parent=1 // pred_fallthru
      _
    %282 = vsyncpa [#allocation4], 1
    %283 = vsyncpa [#allocation7], 1
    %284 = vsyncpa [#allocation10], 1
    %285 = vsyncpa [#allocation5], 1

</llo_original>
